<compile_context>
chip_gen: v5e
topology: v5e:2x2
jax: 0.10.0
libtpu: 0.0.40
codegen_flags: <defaults>
</compile_context>

<pallas_src>
import functools

import jax
import jax.numpy as jnp
import numpy as np
from jax.experimental import pallas as pl
from jax.experimental.pallas import tpu as pltpu


def _round_up(x, m):
    return ((x + m - 1) // m) * m


def _pick_row_tile(n):
    """Largest row tile <= 512 that divides N (8-sublane aligned); else full extent."""
    for cand in (512, 256, 128, 64, 32):
        if cand <= n and n % cand == 0:
            return cand
    return n


def _pick_col_tile(n2):
    """Largest contraction (k) tile <= 2048 that divides 2N; else full extent."""
    for cand in (2048, 1024, 512, 256, 128):
        if cand <= n2 and n2 % cand == 0:
            return cand
    return n2


# --------------------------------------------------------------------------------------
# Kernel 1 (tiny, un-gridded, runs once): attention bias of the K anchor rows.
#   anchor_emb = L1-normalize(sum_r A_r[anchors] @ XW_r + b1h)
#   att2       = anchor_emb @ watt2 + batt2
# Uses the same fused RHS as the main kernel (only its XW half).
# --------------------------------------------------------------------------------------
def _anchor_att2_kernel(aa_ref, rhs_ref, b1h_ref, watt2_ref, batt2_ref, out_ref, *, FP):
    emb = (jnp.dot(aa_ref[...], rhs_ref[:, :FP],
                   preferred_element_type=jnp.float32) + b1h_ref[...])
    inv = pl.reciprocal(
        jnp.maximum(jnp.sum(jnp.abs(emb), axis=-1, keepdims=True), 1e-12), approx=True)
    emb = emb * inv
    # VPU broadcast-multiply + lane reduction instead of a width-1 matmul.
    out_ref[...] = jnp.sum(emb * watt2_ref[...], axis=-1, keepdims=True) + batt2_ref[...]


# --------------------------------------------------------------------------------------
# Kernel 2: main forward pass, grid = (row tiles [parallel], k tiles over 2N [arbitrary]).
# --------------------------------------------------------------------------------------
def _main_kernel(a_ref, rhs_ref, x2_ref, b1h_ref, banc_ref, watt1_ref, att2_ref,
                 wcomb_ref, bcomb_ref, out_ref, acc_ref, *, FP):
    k = pl.program_id(1)

    @pl.when(k == 0)
    def _():
        acc_ref[...] = jnp.zeros_like(acc_ref)

    # int8 adjacency tile -> bf16 widen (VPU, hidden under DMA/MXU), one fused matmul:
    #   acc[:, :FP] accumulates sum_r A_r @ (x1 @ W_r)      (reassociated conv_one_hot)
    #   acc[:, FP:] accumulates (A_0 + A_1) @ anchor_onehot  (conv_anchor, param=False)
    a = a_ref[...].astype(jnp.float32).astype(jnp.bfloat16)
    acc_ref[...] += jnp.dot(a, rhs_ref[...], preferred_element_type=jnp.float32)

    @pl.when(k == pl.num_programs(1) - 1)
    def _():
        acc = acc_ref[...]

        # ---- conv_one_hot: + bias, L1 normalize ----
        out_x1 = acc[:, :FP] + b1h_ref[...]
        inv1 = pl.reciprocal(
            jnp.maximum(jnp.sum(jnp.abs(out_x1), axis=-1, keepdims=True), 1e-12),
            approx=True)
        out_x1 = out_x1 * inv1

        # ---- conv_anchor: + bias, L1 normalize ----
        out_x2 = acc[:, FP:] + banc_ref[...]
        inv2 = pl.reciprocal(
            jnp.maximum(jnp.sum(jnp.abs(out_x2), axis=-1, keepdims=True), 1e-12),
            approx=True)
        out_x2 = out_x2 * inv2

        # ---- attention: att1 on VPU; att2 precomputed with -1e30 in padded lanes ----
        att1 = jnp.sum(out_x1 * watt1_ref[...], axis=-1, keepdims=True)    # (tm, 1)
        att = att1 + att2_ref[...]                                         # (tm, KP)
        att = att - jnp.max(att, axis=-1, keepdims=True)
        e = jnp.exp(att)
        att = e / jnp.sum(e, axis=-1, keepdims=True)   # exact divide (output path)

        # ---- combine (bf16 MXU operands, f32 accumulate) + final exact L1 normalize ----
        out_x = out_x2 * att + x2_ref[...].astype(jnp.float32)
        out = (jnp.dot(out_x.astype(jnp.bfloat16), wcomb_ref[...],
                       preferred_element_type=jnp.float32) + bcomb_ref[...])
        out_ref[...] = out / jnp.maximum(
            jnp.sum(jnp.abs(out), axis=-1, keepdims=True), 1e-12)


# --------------------------------------------------------------------------------------
# Wrapper
# --------------------------------------------------------------------------------------
def model_forward(A, x1, x2, anchor_onehot, anchor_nodes, params,
                  *, row_tile=None, col_tile=None):
    f32, bf16 = jnp.float32, jnp.bfloat16
    N = x1.shape[0]
    K = anchor_onehot.shape[1]
    F = params["w1h0"].shape[1]
    FP = _round_up(max(F, 1), 128)      # lane-dense feature width
    KP = _round_up(max(K, 1), 128)      # lane-dense anchor width
    C = FP + KP                         # fused RHS lane width (>= 256)

    tm = row_tile or _pick_row_tile(N)
    tk = col_tile or _pick_col_tile(2 * N)
    assert N % tm == 0 and (2 * N) % tk == 0
    grid = (N // tm, (2 * N) // tk)

    # ---- adjacency: concat relations along columns; values are small ints -> int8 ----
    A_cat = jnp.concatenate([A[0], A[1]], axis=1).astype(jnp.int8)          # (N, 2N)

    # ---- stage-1 matmul eliminated: x1 is one-hot, so x1 @ W_r is a row gather ----
    perm = jnp.argmax(x1, axis=1)
    xw0 = jnp.pad(params["w1h0"], ((0, 0), (0, FP - F)))[perm]              # (N, FP)
    xw1 = jnp.pad(params["w1h1"], ((0, 0), (0, FP - F)))[perm]              # (N, FP)
    anc_p = jnp.pad(anchor_onehot, ((0, 0), (0, KP - K)))                   # (N, KP)
    # fused RHS: [XW_r | anchor_onehot] stacked over relations -> (2N, FP+KP), bf16
    rhs = jnp.concatenate(
        [jnp.concatenate([xw0, anc_p], axis=1),
         jnp.concatenate([xw1, anc_p], axis=1)], axis=0).astype(bf16)

    x2p = jnp.pad(x2, ((0, 0), (0, KP - K))).astype(bf16)                   # (N, KP)

    # zero-padded (lane-dense) parameters; biases / attention vectors kept f32
    b1h = jnp.pad(params["b1h"], ((0, 0), (0, FP - F))).astype(f32)          # (1, FP)
    banc = jnp.pad(params["banc"], ((0, 0), (0, KP - K))).astype(f32)        # (1, KP)
    watt1 = jnp.pad(params["watt1"][:, 0][None, :], ((0, 0), (0, FP - F))).astype(f32)
    watt2 = jnp.pad(params["watt2"][:, 0][None, :], ((0, 0), (0, FP - F))).astype(f32)
    batt2 = params["batt2"].astype(f32)                                      # (1, 1)
    wcomb = jnp.pad(params["wcomb"], ((0, KP - K), (0, FP - F))).astype(bf16)  # (KP, FP)
    bcomb = jnp.pad(params["bcomb"], ((0, 0), (0, FP - F))).astype(f32)      # (1, FP)

    # ---- stage A: anchor attention bias (K rows; tiny, runs once) ----
    KS = _round_up(K, 8)
    Aa = jnp.pad(A_cat[anchor_nodes].astype(bf16), ((0, KS - K), (0, 0)))    # (KS, 2N)
    vmem = pl.BlockSpec(memory_space=pltpu.MemorySpace.VMEM)
    att2_col = pl.pallas_call(
        functools.partial(_anchor_att2_kernel, FP=FP),
        out_shape=jax.ShapeDtypeStruct((KS, 1), f32),
        in_specs=[vmem] * 5,
        out_specs=vmem,
        compiler_params=pltpu.CompilerParams(vmem_limit_bytes=48 * 1024 * 1024),
    )(Aa, rhs, b1h, watt2, batt2)
    # layout plumbing (runs once): bake the padded-anchor softmax mask into a lane-dense
    # f32 row with -1e30 in the padded lanes -> no iota/where inside the main kernel.
    att2_row = jnp.where(jnp.arange(KP) < K,
                         jnp.pad(att2_col[:K, 0], (0, KP - K)),
                         jnp.float32(-1e30))[None, :].astype(f32)

    # ---- stage B: main pass (rows parallel across TensorCores, k reduction arbitrary) ----
    cparams = pltpu.CompilerParams(
        dimension_semantics=("parallel", "arbitrary"),
        vmem_limit_bytes=48 * 1024 * 1024)

    out_p = pl.pallas_call(
        functools.partial(_main_kernel, FP=FP),
        grid=grid,
        in_specs=[pl.BlockSpec((tm, tk), lambda i, k: (i, k)),    # A rows (int8)
                  pl.BlockSpec((tk, C), lambda i, k: (k, 0)),     # fused RHS (bf16)
                  pl.BlockSpec((tm, KP), lambda i, k: (i, 0)),    # x2 (bf16)
                  pl.BlockSpec((1, FP), lambda i, k: (0, 0)),     # b1h
                  pl.BlockSpec((1, KP), lambda i, k: (0, 0)),     # banc
                  pl.BlockSpec((1, FP), lambda i, k: (0, 0)),     # watt1
                  pl.BlockSpec((1, KP), lambda i, k: (0, 0)),     # att2 (pre-masked)
                  pl.BlockSpec((KP, FP), lambda i, k: (0, 0)),    # wcomb (bf16)
                  pl.BlockSpec((1, FP), lambda i, k: (0, 0))],    # bcomb
        out_specs=pl.BlockSpec((tm, FP), lambda i, k: (i, 0)),
        out_shape=jax.ShapeDtypeStruct((N, FP), f32),
        scratch_shapes=[pltpu.VMEM((tm, C), f32)],                # fused accumulator
        compiler_params=cparams,
    )(A_cat, rhs, x2p, b1h, banc, watt1, att2_row, wcomb, bcomb)

    return out_p[:, :F]


def model_forward_ref(A, x1, x2, anchor_onehot, anchor_nodes, params):
    """Pure-JAX f32 reference of the same math (for correctness check)."""
    out_x1 = (A[0] @ x1 @ params["w1h0"] + A[1] @ x1 @ params["w1h1"] + params["b1h"])
    out_x1 = out_x1 / jnp.maximum(jnp.sum(jnp.abs(out_x1), -1, keepdims=True), 1e-12)
    out_x2 = A[0] @ anchor_onehot + A[1] @ anchor_onehot + params["banc"]
    out_x2 = out_x2 / jnp.maximum(jnp.sum(jnp.abs(out_x2), -1, keepdims=True), 1e-12)
    anchor_emb = out_x1[anchor_nodes]
    att1 = out_x1 @ params["watt1"]
    att2 = anchor_emb @ params["watt2"] + params["batt2"]
    att = jax.nn.softmax(att1 + att2.T, axis=1)
    out_x = out_x2 * att + x2
    out = out_x @ params["wcomb"] + params["bcomb"]
    return out / jnp.maximum(jnp.sum(jnp.abs(out), -1, keepdims=True), 1e-12)


if __name__ == "__main__":
    # Small deterministic problem: N nodes, F output features, K anchors, 2 relations.
    N, F, K, R = 16, 8, 4, 2
    key = jax.random.PRNGKey(0)
    keys = jax.random.split(key, 12)

    # Graph: dense per-relation adjacency (deterministic bernoulli + self loops).
    A = (jax.random.bernoulli(keys[0], 0.25, (R, N, N))).astype(jnp.float32)
    A = A + jnp.broadcast_to(jnp.eye(N, dtype=jnp.float32), (R, N, N))

    # Inputs: x1 = one-hot node encoding, x2 = pre-positioning vectors.
    x1 = jnp.eye(N, dtype=jnp.float32)
    x2 = jax.random.normal(keys[1], (N, K), dtype=jnp.float32) * 0.1

    # Anchor nodes and derived one-hot matrix.
    anchor_nodes = jnp.array([1, 5, 9, 13], dtype=jnp.int32)
    anchor_onehot = jnp.zeros((N, K), jnp.float32).at[anchor_nodes, jnp.arange(K)].add(1.0)

    # Parameters (deterministic init; biases kept 2-D for lane-friendly broadcast).
    s = 0.1
    params = {
        "w1h0":  s * jax.random.normal(keys[2],  (N, F), dtype=jnp.float32),
        "w1h1":  s * jax.random.normal(keys[3],  (N, F), dtype=jnp.float32),
        "b1h":   s * jax.random.normal(keys[4],  (1, F), dtype=jnp.float32),
        "banc":  s * jax.random.normal(keys[5],  (1, K), dtype=jnp.float32),
        "watt1": s * jax.random.normal(keys[6],  (F, 1), dtype=jnp.float32),
        "watt2": s * jax.random.normal(keys[7],  (F, 1), dtype=jnp.float32),
        "batt2": s * jax.random.normal(keys[8],  (1, 1), dtype=jnp.float32),
        "wcomb": s * jax.random.normal(keys[9],  (K, F), dtype=jnp.float32),  # torch weight.T
        "bcomb": s * jax.random.normal(keys[10], (1, F), dtype=jnp.float32),
    }

    out = model_forward(A, x1, x2, anchor_onehot, anchor_nodes, params)
    out = jax.block_until_ready(out)

    # Reference uses the same bf16-rounded GCN / combine weights and x2 that the kernel
    # sees (adjacency and one-hots are exact in int8/bf16); tolerance covers the approx
    # reciprocals on intermediate norms and the bf16 combine operand.
    params_q = dict(params)
    for name in ("w1h0", "w1h1", "wcomb"):
        params_q[name] = params[name].astype(jnp.bfloat16).astype(jnp.float32)
    x2_q = x2.astype(jnp.bfloat16).astype(jnp.float32)
    ref = model_forward_ref(A, x1, x2_q, anchor_onehot, anchor_nodes, params_q)

    assert out.shape == (N, F)
    assert np.allclose(np.asarray(out), np.asarray(ref), atol=3e-3, rtol=2e-2)
    print("KERNEL_OK")
</pallas_src>

<mosaic_0001>
module attributes {stable_mosaic.version = 11 : i64} {
  func.func @_anchor_att2_kernel(%arg0: memref<8x32xbf16, #tpu.memory_space<vmem>>, %arg1: memref<32x256xbf16, #tpu.memory_space<vmem>>, %arg2: memref<1x128xf32, #tpu.memory_space<vmem>>, %arg3: memref<1x128xf32, #tpu.memory_space<vmem>>, %arg4: memref<1x1xf32, #tpu.memory_space<vmem>>, %arg5: memref<8x1xf32, #tpu.memory_space<vmem>>) attributes {dimension_semantics = [], scalar_prefetch = 0 : i64, scratch_operands = 0 : i64, tpu.core_type = #tpu.core_type<tc>} {
    %c0 = arith.constant 0 : index
    %c0_0 = arith.constant 0 : index
    %0 = vector.load %arg0[%c0, %c0_0] : memref<8x32xbf16, #tpu.memory_space<vmem>>, vector<8x32xbf16>
    %c0_1 = arith.constant 0 : index
    %c0_2 = arith.constant 0 : index
    %1 = vector.load %arg1[%c0_1, %c0_2] : memref<32x256xbf16, #tpu.memory_space<vmem>>, vector<32x128xbf16>
    %cst = arith.constant dense<0.000000e+00> : vector<8x128xf32>
    %2 = tpu.matmul %0, %1, %cst {dimension_numbers = #tpu.dot_dimension_numbers<[1], [0], [0], [1], [0, 0, 1, 1], [], []>} : vector<8x32xbf16>, vector<32x128xbf16>, vector<8x128xf32> -> vector<8x128xf32>
    %c0_3 = arith.constant 0 : index
    %c0_4 = arith.constant 0 : index
    %3 = vector.load %arg2[%c0_3, %c0_4] : memref<1x128xf32, #tpu.memory_space<vmem>>, vector<1x128xf32>
    %4 = vector.broadcast %3 : vector<1x128xf32> to vector<8x128xf32>
    %5 = arith.addf %2, %4 : vector<8x128xf32>
    %6 = math.absf %5 : vector<8x128xf32>
    %cst_5 = arith.constant dense<0.000000e+00> : vector<8xf32>
    %7 = vector.multi_reduction <add>, %6, %cst_5 [1] : vector<8x128xf32> to vector<8xf32>
    %8 = vector.shape_cast %7 : vector<8xf32> to vector<8x1xf32>
    %cst_6 = arith.constant 9.99999996E-13 : f32
    %9 = vector.broadcast %cst_6 : f32 to vector<8x1xf32>
    %10 = arith.maximumf %8, %9 : vector<8x1xf32>
    %11 = tpu.reciprocal %10 {approx = true} : vector<8x1xf32> -> vector<8x1xf32>
    %12 = vector.broadcast %11 : vector<8x1xf32> to vector<8x128xf32>
    %13 = arith.mulf %5, %12 : vector<8x128xf32>
    %c0_7 = arith.constant 0 : index
    %c0_8 = arith.constant 0 : index
    %14 = vector.load %arg3[%c0_7, %c0_8] : memref<1x128xf32, #tpu.memory_space<vmem>>, vector<1x128xf32>
    %15 = vector.broadcast %14 : vector<1x128xf32> to vector<8x128xf32>
    %16 = arith.mulf %13, %15 : vector<8x128xf32>
    %cst_9 = arith.constant dense<0.000000e+00> : vector<8xf32>
    %17 = vector.multi_reduction <add>, %16, %cst_9 [1] : vector<8x128xf32> to vector<8xf32>
    %18 = vector.shape_cast %17 : vector<8xf32> to vector<8x1xf32>
    %c0_10 = arith.constant 0 : index
    %c0_11 = arith.constant 0 : index
    %19 = vector.load %arg4[%c0_10, %c0_11] : memref<1x1xf32, #tpu.memory_space<vmem>>, vector<1x1xf32>
    %20 = vector.broadcast %19 : vector<1x1xf32> to vector<8x1xf32>
    %21 = arith.addf %18, %20 : vector<8x1xf32>
    %c0_12 = arith.constant 0 : index
    %c0_13 = arith.constant 0 : index
    %22 = vector.load %arg5[%c0_12, %c0_13] : memref<8x1xf32, #tpu.memory_space<vmem>>, vector<8x1xf32>
    tpu.vector_store %arg5[%c0_12, %c0_13], %21 {strides = array<i32>} : memref<8x1xf32, #tpu.memory_space<vmem>>, vector<8x1xf32>,
    return
  }
}

</mosaic_0001>

<llo_original>
// kernel: tpu_custom_call.1
$region0: #{tpu_custom_call.1}
  #allocation0 [shape = 'u32[]', space=smem, size = 0x4, offset = 0x4, fixed_abs, tag = 'smem constant byte address 0x4 - core index']
  #allocation1 [shape = 'u32[72,128]{1,0:T(1,128)}', space=vmem, size = 0x9000, scoped, tag = 'internal scratch']
  #allocation2 [shape = 'f32[1,1]{1,0:T(1,128)S(1)}', space=vmem, size = 0x200, scoped, tag = 'scoped memory for tpu_custom_call.1']
  %s0 = inlined_call_operand.hbm [shape: bf16[8,32], index: 0, kind: input, shape index: {}]
  %s1 = inlined_call_operand.hbm [shape: bf16[32,256], index: 1, kind: input, shape index: {}]
  %s2 = inlined_call_operand.vmem [shape: f32[1,128], index: 2, kind: input, shape index: {}]
  %s3 = inlined_call_operand.vmem [shape: f32[1,128], index: 3, kind: input, shape index: {}]
  %s4 = inlined_call_operand.<no memory space> [shape: f32[1,1], index: 4, kind: input, shape index: {}]
  %s5 = inlined_call_operand.vmem [shape: f32[8,1], index: 5, kind: output, shape index: {}]
  %s6 = sld [smem:[#allocation0]]
  $region38: #{tpu_custom_call.1} parent=0
    _
  %s8 = ssub.s32 1, %s6
  %s9 = scalar_select 0, %s8, %s6
  %v10 = vstv %s4
  %11 = vst [vmem:[#allocation2] sm:$0x1] %v10
  $region1: #{tpu_custom_call.1} parent=0
    #allocation3 [shape = 'u8[2048]{0}', space=vmem, size = 0x800, scoped, tag = 'input window, operand 0, single buffered']
    #allocation4 [shape = 's32[1]{0}', space=sflag, size = 0x4, scoped, tag = 'scoped memory for tpu_custom_call.1']
    #allocation5 [shape = 'u8[16384]{0}', space=vmem, size = 0x4000, scoped, tag = 'input window, operand 1, single buffered']
    #allocation6 [shape = 's32[1]{0}', space=sflag, size = 0x4, scoped, tag = 'scoped memory for tpu_custom_call.1']
    %12 = vsyncpa [#allocation4], 0
    %13 = vsyncpa [#allocation6], 0
    // Predicated region
    $region2: #{tpu_custom_call.1} parent=1 // pred_check
      _
    $region3: #{tpu_custom_call.1} parent=1 // pred_check_branch
      %15 = sbr.rel (0) target = $region5
    $region4: #{tpu_custom_call.1} parent=1 // pred_region
      %17 = vsyncadd [#allocation4], 0
      %s19 = sshll.u32 %s0, 4
      %s20 = int_to_ptr.hbm [resolvable:$true] %s19
      %s21 = sshll.u32 [#allocation3], 4
      %s22 = int_to_ptr.vmem [resolvable:$true] %s21
      %24 = dma.hbm_to_vmem [thread:$0]  %s20, 64, %s22, [#allocation4]
    $region5: #{tpu_custom_call.1} parent=1 // pred_fallthru
      _
    // Predicated region
    $region6: #{tpu_custom_call.1} parent=1 // pred_check
      _
    $region7: #{tpu_custom_call.1} parent=1 // pred_check_branch
      %26 = sbr.rel (0) target = $region9
    $region8: #{tpu_custom_call.1} parent=1 // pred_region
      %28 = vsyncadd [#allocation6], 0
      %s29 = sshll.u32 %s1, 4
      %s30 = int_to_ptr.hbm [resolvable:$true] %s29
      %s31 = sshll.u32 [#allocation5], 4
      %s32 = int_to_ptr.vmem [resolvable:$true] %s31
      %37 = dma.hbm_to_vmem [thread:$0]  %s30, 512, %s32, [#allocation6], 128, 128, 8
    $region9: #{tpu_custom_call.1} parent=1 // pred_fallthru
      _
    // Predicated region
    $region10: #{tpu_custom_call.1} parent=1 // pred_check
      _
    $region11: #{tpu_custom_call.1} parent=1 // pred_check_branch
      %39 = sbr.rel (0) target = $region13
    $region12: #{tpu_custom_call.1} parent=1 // pred_region
      _
    $region13: #{tpu_custom_call.1} parent=1 // pred_fallthru
      _
    // Predicated region
    $region14: #{tpu_custom_call.1} parent=1 // pred_check
      _
    $region15: #{tpu_custom_call.1} parent=1 // pred_check_branch
      %41 = sbr.rel (0) target = $region17
    $region16: #{tpu_custom_call.1} parent=1 // pred_region
      _
    $region17: #{tpu_custom_call.1} parent=1 // pred_fallthru
      _
    // Predicated region
    $region18: #{tpu_custom_call.1} parent=1 // pred_check
      _
    $region19: #{tpu_custom_call.1} parent=1 // pred_check_branch
      %43 = sbr.rel (0) target = $region21
    $region20: #{tpu_custom_call.1} parent=1 // pred_region
      _
    $region21: #{tpu_custom_call.1} parent=1 // pred_fallthru
      _
    // Predicated region
    $region22: #{tpu_custom_call.1} parent=1 // pred_check
      _
    $region23: #{tpu_custom_call.1} parent=1 // pred_check_branch
      %45 = sbr.rel (0) target = $region25
    $region24: #{tpu_custom_call.1} parent=1 // pred_region
      %47 = dma.done [#allocation4], 64
    $region25: #{tpu_custom_call.1} parent=1 // pred_fallthru
      _
    // Predicated region
    $region26: #{tpu_custom_call.1} parent=1 // pred_check
      _
    $region27: #{tpu_custom_call.1} parent=1 // pred_check_branch
      %49 = sbr.rel (0) target = $region29
    $region28: #{tpu_custom_call.1} parent=1 // pred_region
      %51 = dma.done [#allocation6], 512
    $region29: #{tpu_custom_call.1} parent=1 // pred_fallthru
      _
    %v53 = vld [vmem:[#allocation3] sm:$0xf]
    %v54 = vld [vmem:[#allocation5] sm:$0xf]
    %v55 = vld [vmem:[#allocation5 + $0x8] sm:$0xf]
    %v56 = vld [vmem:[#allocation5 + $0x10] sm:$0xf]
    %v57 = vld [vmem:[#allocation5 + $0x18] sm:$0xf]
    %v58 = vld [vmem:[%s2] sm:$0x1]
    %v60 = vperm.slane %v58, 0
    %v66 = vunpack.c.l.b16 %v54
    %v67 = vunpack.c.l.b16 %v55
    %v68 = vunpack.c.l.b16 %v56
    %v69 = vunpack.c.l.b16 %v57
    %v70 = vpack.c.b16 %v67, %v66
    %v71 = vpack.c.b16 %v69, %v68
    %vm74 = vcmask 261120
    %v76 = vsel %vm74, %v53, 0
    %78 = vmatpush.bf16.msra.mxu0 0
    %79 = vmatpush.bf16.msra.mxu0 0
    %80 = vmatpush.bf16.msra.mxu0 0
    %81 = vmatpush.bf16.msra.mxu0 0
    %82 = vmatpush.bf16.msra.mxu0 0
    %83 = vmatpush.bf16.msra.mxu0 0
    %84 = vmatpush.bf16.msra.mxu0 %v71
    %85 = vmatpush.bf16.msra.mxu0 %v70
    %86 = vmatmul.bf16.gmra.mxu0 %v76
    %v87 = vpop.f32.mrf.mxu0
    %v88 = vadd.f32 %v60, %v87
    %v89 = vpop.f32.mrf.mxu0
    %90 = vdwg.mxu0
    %v91 = vand.u32 2147483647, %v88
    %92 = vadd.xlane.f32.xlu0 %v91
    %v93 = vpop.xlane.xlu0 %92
    %v94 = vmax.f32 %v93, 1e-12
    %v95 = vrcp.pop %v94
    %v96 = vmul.f32 %v88, %v95
    %v97 = vld [vmem:[%s3] sm:$0x1]
    %v99 = vperm.slane %v97, 0
    %v101 = vmul.f32 %v96, %v99
    %102 = vadd.xlane.f32.xlu0 %v101
    %v103 = vpop.xlane.xlu0 %102
    %v104 = vld [vmem:[#allocation2] sm:$0x1]
    %v106 = vperm.slane %v104, 0
    %v108 = vadd.f32 %v103, %v106
    %vm109 = vcmask 7168
    %110 = vst.msk [vmem:[%s5] sm:$0xff] %vm109, %v108
    // Predicated region
    $region30: #{tpu_custom_call.1} parent=1 // pred_check
      _
    $region31: #{tpu_custom_call.1} parent=1 // pred_check_branch
      %112 = sbr.rel (0) target = $region33
    $region32: #{tpu_custom_call.1} parent=1 // pred_region
      _
    $region33: #{tpu_custom_call.1} parent=1 // pred_fallthru
      _
    // Predicated region
    $region34: #{tpu_custom_call.1} parent=1 // pred_check
      _
    $region35: #{tpu_custom_call.1} parent=1 // pred_check_branch
      %114 = sbr.rel (0) target = $region37
    $region36: #{tpu_custom_call.1} parent=1 // pred_region
      _
    $region37: #{tpu_custom_call.1} parent=1 // pred_fallthru
      _
    %115 = vsyncpa [#allocation4], 1
    %116 = vsyncpa [#allocation6], 1

</llo_original>
